<compile_context>
chip_gen: v7x
topology: tpu7x:2x2x1
jax: 0.10.0
libtpu: 0.0.40
codegen_flags: <defaults>
</compile_context>

<pallas_src>
import jax
import jax.numpy as jnp
from jax.experimental import pallas as pl
from jax.experimental.pallas import tpu as pltpu


def affinity_kernel(labels_ref, gid_ref, nedges_ref,
                    w1_ref, b1_ref, w2_ref, b2_ref, out_ref, acc_ref):
    # acc_ref: [G, D] running segment-sum of edge embeddings (f32).
    @pl.when(pl.program_id(0) == 0)
    def _init():
        acc_ref[...] = jnp.zeros_like(acc_ref)

    # Per-edge-tile linear + ReLU in transposed (lane-dense) layout:
    #   emb_t[d, e] = relu( sum_c W1[c, d] * labels[e, c] + b1[d] )
    emb_t = jnp.dot(w1_ref[...], labels_ref[...],
                    preferred_element_type=jnp.float32) + b1_ref[...]
    emb_t = jnp.maximum(emb_t, 0.0)                               # [D, TILE_E]

    # Per-tile one-hot scatter: onehot[g, e] = (graph_index[e] == g).
    # Padded edges carry graph id -1 and thus contribute nothing.
    g = acc_ref.shape[0]
    tile_e = emb_t.shape[1]
    g_iota = jax.lax.broadcasted_iota(jnp.int32, (g, tile_e), 0)
    onehot = (g_iota == gid_ref[...]).astype(jnp.float32)         # [G, TILE_E]

    # Segment-sum on the MXU: acc[g, d] += sum_e onehot[g, e] * emb_t[d, e]
    acc_ref[...] += jax.lax.dot_general(
        onehot, emb_t, (((1,), (1,)), ((), ())),
        preferred_element_type=jnp.float32)                       # [G, D]

    @pl.when(pl.program_id(0) == pl.num_programs(0) - 1)
    def _finalize():
        # Fused W2: r[0, :] = edge_sum @ W2[:D], r[1, :] = edge_sum @ W2[D:]
        r = jax.lax.dot_general(
            w2_ref[...], acc_ref[...], (((1,), (1,)), ((), ())),
            preferred_element_type=jnp.float32)                   # [2, G]
        # edge_mean scaling: exact reciprocal on the tiny [1, G] row only.
        # (No clamp for empty graphs: 0 * inf -> nan, matching reference 0/0.)
        inv_n = pl.reciprocal(nedges_ref[...], approx=False)      # [1, G]
        aff = r[0:1, :] + r[1:2, :] * inv_n + b2_ref[...]         # [1, G]
        out_ref[...] = jax.nn.sigmoid(aff)                        # affinity_act


def _round_up(x, m):
    return ((x + m - 1) // m) * m


def affinity_predictor(labels, graph_index, n_edges, w1, b1, w2, b2, *, tile_e=512):
    """labels [E, C], graph_index [E] int, n_edges [G, 1], w1 [C, D], b1 [1, D],
    w2 [2D, 1], b2 [1, 1].  Returns affinity [G, 1]."""
    E, C = labels.shape
    D = w1.shape[1]
    G = n_edges.shape[0]

    # Pad E up to a multiple of the tile size; padded edges get graph id -1 so
    # their one-hot row is all-zero and they contribute nothing.
    tile_e = min(tile_e, _round_up(E, 128))
    e_pad = _round_up(E, tile_e)
    n_tiles = e_pad // tile_e

    labels_t = jnp.zeros((C, e_pad), jnp.float32).at[:, :E].set(
        labels.T.astype(jnp.float32))                              # [C, E_pad]
    gid_row = jnp.full((1, e_pad), -1, jnp.int32).at[0, :E].set(
        graph_index.astype(jnp.int32))                             # [1, E_pad]
    n_row = n_edges.astype(jnp.float32).reshape(1, G)              # [1, G]
    w1_t = w1.T.astype(jnp.float32)                                # [D, C]
    b1_col = b1.reshape(D, 1).astype(jnp.float32)                  # [D, 1]
    w2_rows = w2.reshape(2, D).astype(jnp.float32)                 # [2, D]
    b2_s = b2.reshape(1, 1).astype(jnp.float32)                    # [1, 1]

    grid_spec = pltpu.PrefetchScalarGridSpec(
        num_scalar_prefetch=0,
        grid=(n_tiles,),
        in_specs=[
            pl.BlockSpec((C, tile_e), lambda i: (0, i)),   # labels tile (lane-dense)
            pl.BlockSpec((1, tile_e), lambda i: (0, i)),   # graph ids tile
            pl.BlockSpec((1, G), lambda i: (0, 0)),        # n_edges (resident)
            pl.BlockSpec((D, C), lambda i: (0, 0)),        # W1^T
            pl.BlockSpec((D, 1), lambda i: (0, 0)),        # b1
            pl.BlockSpec((2, D), lambda i: (0, 0)),        # W2 rows (sum/mean halves)
            pl.BlockSpec((1, 1), lambda i: (0, 0)),        # b2
        ],
        out_specs=pl.BlockSpec((1, G), lambda i: (0, 0)),  # lane-dense [1, G]
        scratch_shapes=[pltpu.VMEM((G, D), jnp.float32)],  # edge_sum accumulator
    )

    out_row = pl.pallas_call(
        affinity_kernel,
        out_shape=jax.ShapeDtypeStruct((1, G), jnp.float32),
        grid_spec=grid_spec,
        compiler_params=pltpu.CompilerParams(
            dimension_semantics=("arbitrary",),     # E is a reduction axis
            vmem_limit_bytes=32 * 1024 * 1024,      # explicit; safe on v5e/v6e/v7x
        ),
    )(labels_t, gid_row, n_row, w1_t, b1_col, w2_rows, b2_s)

    return out_row.reshape(G, 1)


def reference(labels, graph_index, n_edges, w1, b1, w2, b2):
    emb = jax.nn.relu(labels @ w1 + b1)
    G = n_edges.shape[0]
    edge_sum = jax.ops.segment_sum(emb, graph_index, num_segments=G)
    edge_mean = edge_sum / n_edges
    aff = jnp.concatenate([edge_sum, edge_mean], axis=1) @ w2 + b2
    return jax.nn.sigmoid(aff)


if __name__ == "__main__":
    # Small but grid-exercising shapes implied by the module's forward:
    E = 2048   # interaction edges (4 grid steps of TILE_E=512)
    C = 8      # n_interaction_categories
    D = 16     # interaction_embedding_size
    G = 8      # graphs in the batch

    key = jax.random.PRNGKey(0)
    k_lab, k_gid, k_w1, k_b1, k_w2, k_b2 = jax.random.split(key, 6)

    labels = jax.random.normal(k_lab, (E, C), dtype=jnp.float32)
    # Unsorted scatter: random graph assignment per edge.
    graph_index = jax.random.randint(k_gid, (E,), 0, G, dtype=jnp.int32)
    counts = jnp.zeros((G,), jnp.float32).at[graph_index].add(1.0)
    n_edges = counts.reshape(G, 1)

    # Deterministic parameter init (Linear(C, D) and Linear(2D, 1))
    w1 = jax.random.normal(k_w1, (C, D), dtype=jnp.float32) * 0.1
    b1 = jax.random.normal(k_b1, (1, D), dtype=jnp.float32) * 0.1
    w2 = jax.random.normal(k_w2, (2 * D, 1), dtype=jnp.float32) * 0.02
    b2 = jax.random.normal(k_b2, (1, 1), dtype=jnp.float32) * 0.02

    out = affinity_predictor(labels, graph_index, n_edges, w1, b1, w2, b2)
    out = jax.block_until_ready(out)

    ref = reference(labels, graph_index, n_edges, w1, b1, w2, b2)
    assert out.shape == (G, 1)
    assert jnp.allclose(out, ref, atol=1e-4, rtol=1e-4), (out, ref)

    print("KERNEL_OK")
</pallas_src>

<mosaic_0001>
module attributes {stable_mosaic.version = 11 : i64} {
  func.func @affinity_kernel(%arg0: i32, %arg1: memref<8x512xf32, #tpu.memory_space<vmem>>, %arg2: memref<1x512xi32, #tpu.memory_space<vmem>>, %arg3: memref<1x8xf32, #tpu.memory_space<vmem>>, %arg4: memref<16x8xf32, #tpu.memory_space<vmem>>, %arg5: memref<16x1xf32, #tpu.memory_space<vmem>>, %arg6: memref<2x16xf32, #tpu.memory_space<vmem>>, %arg7: memref<1x1xf32, #tpu.memory_space<vmem>>, %arg8: memref<1x8xf32, #tpu.memory_space<vmem>>, %arg9: memref<8x16xf32, #tpu.memory_space<vmem>>) attributes {dimension_semantics = [#tpu.dimension_semantics<arbitrary>], iteration_bounds = array<i64: 4>, scalar_prefetch = 0 : i64, scratch_operands = 1 : i64, tpu.core_type = #tpu.core_type<tc>, window_params = [{transform_indices = @transform_0, window_bounds = array<i64: 8, 512>}, {transform_indices = @transform_1, window_bounds = array<i64: 1, 512>}, {pipeline_mode = #tpu.pipeline_mode<synchronous>, transform_indices = @transform_2, window_bounds = array<i64: 1, 8>}, {pipeline_mode = #tpu.pipeline_mode<synchronous>, transform_indices = @transform_3, window_bounds = array<i64: 16, 8>}, {pipeline_mode = #tpu.pipeline_mode<synchronous>, transform_indices = @transform_4, window_bounds = array<i64: 16, 1>}, {pipeline_mode = #tpu.pipeline_mode<synchronous>, transform_indices = @transform_5, window_bounds = array<i64: 2, 16>}, {pipeline_mode = #tpu.pipeline_mode<synchronous>, transform_indices = @transform_6, window_bounds = array<i64: 1, 1>}, {pipeline_mode = #tpu.pipeline_mode<synchronous>, transform_indices = @transform_7, window_bounds = array<i64: 1, 8>}]} {
    %c0_i32 = arith.constant 0 : i32
    %0 = arith.cmpi eq, %arg0, %c0_i32 : i32
    %1 = arith.extui %0 : i1 to i32
    %c0_i32_0 = arith.constant 0 : i32
    %2 = arith.cmpi ne, %1, %c0_i32_0 : i32
    scf.if %2 {
      %cst_15 = arith.constant 0.000000e+00 : f32
      %24 = vector.broadcast %cst_15 : f32 to vector<8x16xf32>
      %c0_16 = arith.constant 0 : index
      %c0_17 = arith.constant 0 : index
      %25 = vector.load %arg9[%c0_16, %c0_17] : memref<8x16xf32, #tpu.memory_space<vmem>>, vector<8x16xf32>
      tpu.vector_store %arg9[%c0_16, %c0_17], %24 {strides = array<i32>} : memref<8x16xf32, #tpu.memory_space<vmem>>, vector<8x16xf32>,
    } else {
    }
    %c0 = arith.constant 0 : index
    %c0_1 = arith.constant 0 : index
    %3 = vector.load %arg4[%c0, %c0_1] : memref<16x8xf32, #tpu.memory_space<vmem>>, vector<16x8xf32>
    %c0_2 = arith.constant 0 : index
    %c0_3 = arith.constant 0 : index
    %4 = vector.load %arg1[%c0_2, %c0_3] : memref<8x512xf32, #tpu.memory_space<vmem>>, vector<8x512xf32>
    %cst = arith.constant dense<0.000000e+00> : vector<16x512xf32>
    %5 = tpu.matmul %3, %4, %cst {dimension_numbers = #tpu.dot_dimension_numbers<[1], [0], [0], [1], [0, 0, 1, 1], [], []>} : vector<16x8xf32>, vector<8x512xf32>, vector<16x512xf32> -> vector<16x512xf32>
    %c0_4 = arith.constant 0 : index
    %c0_5 = arith.constant 0 : index
    %6 = vector.load %arg5[%c0_4, %c0_5] : memref<16x1xf32, #tpu.memory_space<vmem>>, vector<16x1xf32>
    %7 = vector.broadcast %6 : vector<16x1xf32> to vector<16x512xf32>
    %8 = arith.addf %5, %7 : vector<16x512xf32>
    %cst_6 = arith.constant 0.000000e+00 : f32
    %9 = vector.broadcast %cst_6 : f32 to vector<16x512xf32>
    %10 = arith.maximumf %8, %9 : vector<16x512xf32>
    %11 = tpu.iota {dimensions = array<i32: 0>} : vector<8x512xi32>
    %c0_7 = arith.constant 0 : index
    %c0_8 = arith.constant 0 : index
    %12 = vector.load %arg2[%c0_7, %c0_8] : memref<1x512xi32, #tpu.memory_space<vmem>>, vector<1x512xi32>
    %13 = vector.broadcast %12 : vector<1x512xi32> to vector<8x512xi32>
    %14 = arith.cmpi eq, %11, %13 : vector<8x512xi32>
    %15 = arith.extui %14 : vector<8x512xi1> to vector<8x512xi32>
    %16 = arith.sitofp %15 : vector<8x512xi32> to vector<8x512xf32>
    %c0_9 = arith.constant 0 : index
    %c0_10 = arith.constant 0 : index
    %17 = vector.load %arg9[%c0_9, %c0_10] : memref<8x16xf32, #tpu.memory_space<vmem>>, vector<8x16xf32>
    %cst_11 = arith.constant dense<0.000000e+00> : vector<8x16xf32>
    %18 = tpu.matmul %16, %10, %cst_11 {dimension_numbers = #tpu.dot_dimension_numbers<[1], [1], [0], [0], [0, 0, 1, 0], [], []>} : vector<8x512xf32>, vector<16x512xf32>, vector<8x16xf32> -> vector<8x16xf32>
    %19 = arith.addf %17, %18 : vector<8x16xf32>
    %c0_12 = arith.constant 0 : index
    %c0_13 = arith.constant 0 : index
    %20 = vector.load %arg9[%c0_12, %c0_13] : memref<8x16xf32, #tpu.memory_space<vmem>>, vector<8x16xf32>
    tpu.vector_store %arg9[%c0_12, %c0_13], %19 {strides = array<i32>} : memref<8x16xf32, #tpu.memory_space<vmem>>, vector<8x16xf32>,
    %c3_i32 = arith.constant 3 : i32
    %21 = arith.cmpi eq, %arg0, %c3_i32 : i32
    %22 = arith.extui %21 : i1 to i32
    %c0_i32_14 = arith.constant 0 : i32
    %23 = arith.cmpi ne, %22, %c0_i32_14 : i32
    scf.if %23 {
      %c0_15 = arith.constant 0 : index
      %c0_16 = arith.constant 0 : index
      %24 = vector.load %arg6[%c0_15, %c0_16] : memref<2x16xf32, #tpu.memory_space<vmem>>, vector<2x16xf32>
      %c0_17 = arith.constant 0 : index
      %c0_18 = arith.constant 0 : index
      %25 = vector.load %arg9[%c0_17, %c0_18] : memref<8x16xf32, #tpu.memory_space<vmem>>, vector<8x16xf32>
      %cst_19 = arith.constant dense<0.000000e+00> : vector<2x8xf32>
      %26 = tpu.matmul %24, %25, %cst_19 {dimension_numbers = #tpu.dot_dimension_numbers<[1], [1], [0], [0], [0, 0, 1, 0], [], []>} : vector<2x16xf32>, vector<8x16xf32>, vector<2x8xf32> -> vector<2x8xf32>
      %c0_20 = arith.constant 0 : index
      %c0_21 = arith.constant 0 : index
      %27 = vector.load %arg3[%c0_20, %c0_21] : memref<1x8xf32, #tpu.memory_space<vmem>>, vector<1x8xf32>
      %28 = tpu.reciprocal %27 : vector<1x8xf32> -> vector<1x8xf32>
      %29 = vector.extract_strided_slice %26 {offsets = [0, 0], sizes = [1, 8], strides = [1, 1]} : vector<2x8xf32> to vector<1x8xf32>
      %30 = vector.extract_strided_slice %26 {offsets = [1, 0], sizes = [1, 8], strides = [1, 1]} : vector<2x8xf32> to vector<1x8xf32>
      %31 = arith.mulf %30, %28 : vector<1x8xf32>
      %32 = arith.addf %29, %31 : vector<1x8xf32>
      %c0_22 = arith.constant 0 : index
      %c0_23 = arith.constant 0 : index
      %33 = vector.load %arg7[%c0_22, %c0_23] : memref<1x1xf32, #tpu.memory_space<vmem>>, vector<1x1xf32>
      %34 = vector.broadcast %33 : vector<1x1xf32> to vector<1x8xf32>
      %35 = arith.addf %32, %34 : vector<1x8xf32>
      %36 = arith.negf %35 : vector<1x8xf32>
      %37 = math.exp %36 : vector<1x8xf32>
      %cst_24 = arith.constant 1.000000e+00 : f32
      %38 = vector.broadcast %cst_24 : f32 to vector<1x8xf32>
      %39 = arith.addf %38, %37 : vector<1x8xf32>
      %40 = arith.divf %38, %39 : vector<1x8xf32>
      %c0_25 = arith.constant 0 : index
      %c0_26 = arith.constant 0 : index
      %41 = vector.load %arg8[%c0_25, %c0_26] : memref<1x8xf32, #tpu.memory_space<vmem>>, vector<1x8xf32>
      tpu.vector_store %arg8[%c0_25, %c0_26], %40 {strides = array<i32>} : memref<1x8xf32, #tpu.memory_space<vmem>>, vector<1x8xf32>,
    } else {
    }
    return
  }
  func.func @transform_0(%arg0: i32) -> (i32, i32) {
    %c0_i32 = arith.constant 0 : i32
    %c0_i32_0 = arith.constant 0 : i32
    return %c0_i32, %arg0 : i32, i32
  }
  func.func @transform_1(%arg0: i32) -> (i32, i32) {
    %c0_i32 = arith.constant 0 : i32
    %c0_i32_0 = arith.constant 0 : i32
    return %c0_i32, %arg0 : i32, i32
  }
  func.func @transform_2(%arg0: i32) -> (i32, i32) {
    %c0_i32 = arith.constant 0 : i32
    %c0_i32_0 = arith.constant 0 : i32
    %c0_i32_1 = arith.constant 0 : i32
    return %c0_i32, %c0_i32_0 : i32, i32
  }
  func.func @transform_3(%arg0: i32) -> (i32, i32) {
    %c0_i32 = arith.constant 0 : i32
    %c0_i32_0 = arith.constant 0 : i32
    %c0_i32_1 = arith.constant 0 : i32
    return %c0_i32, %c0_i32_0 : i32, i32
  }
  func.func @transform_4(%arg0: i32) -> (i32, i32) {
    %c0_i32 = arith.constant 0 : i32
    %c0_i32_0 = arith.constant 0 : i32
    %c0_i32_1 = arith.constant 0 : i32
    return %c0_i32, %c0_i32_0 : i32, i32
  }
  func.func @transform_5(%arg0: i32) -> (i32, i32) {
    %c0_i32 = arith.constant 0 : i32
    %c0_i32_0 = arith.constant 0 : i32
    %c0_i32_1 = arith.constant 0 : i32
    return %c0_i32, %c0_i32_0 : i32, i32
  }
  func.func @transform_6(%arg0: i32) -> (i32, i32) {
    %c0_i32 = arith.constant 0 : i32
    %c0_i32_0 = arith.constant 0 : i32
    %c0_i32_1 = arith.constant 0 : i32
    return %c0_i32, %c0_i32_0 : i32, i32
  }
  func.func @transform_7(%arg0: i32) -> (i32, i32) {
    %c0_i32 = arith.constant 0 : i32
    %c0_i32_0 = arith.constant 0 : i32
    %c0_i32_1 = arith.constant 0 : i32
    return %c0_i32, %c0_i32_0 : i32, i32
  }
}

</mosaic_0001>

<llo_original>
// kernel: tpu_custom_call.1
$region0: #{tpu_custom_call.1}
  #allocation0 [shape = 'u32[]', space=smem, size = 0x4, offset = 0x4, fixed_abs, tag = 'smem constant byte address 0x4 - core index']
  #allocation1 [shape = 'u32[144,128]{1,0:T(1,128)}', space=vmem, size = 0x12000, scoped, tag = 'internal scratch']
  #allocation2 [shape = 'f32[8,16]{1,0:T(8,128)}', space=vmem, size = 0x1000, scoped, tag = 'scratch operand']
  #allocation3 [shape = 'f32[1,1]{1,0:T(1,128)S(1)}', space=vmem, size = 0x200, scoped, tag = 'scoped memory for tpu_custom_call.1']
  %s0 = inlined_call_operand.hbm [shape: f32[8,2048], index: 0, kind: input, shape index: {}]
  %s1 = inlined_call_operand.vmem [shape: s32[1,2048], index: 1, kind: input, shape index: {}]
  %s2 = inlined_call_operand.vmem [shape: f32[1,8], index: 2, kind: input, shape index: {}]
  %s3 = inlined_call_operand.vmem [shape: f32[16,8], index: 3, kind: input, shape index: {}]
  %s4 = inlined_call_operand.vmem [shape: f32[16,1], index: 4, kind: input, shape index: {}]
  %s5 = inlined_call_operand.vmem [shape: f32[2,16], index: 5, kind: input, shape index: {}]
  %s6 = inlined_call_operand.<no memory space> [shape: f32[1,1], index: 6, kind: input, shape index: {}]
  %s7 = inlined_call_operand.hbm [shape: f32[1,8], index: 7, kind: output, shape index: {}]
  %s8 = sld [smem:[#allocation0]]
  $region73: #{tpu_custom_call.1} parent=0
    _
  %s10 = ssub.s32 1, %s8
  %s11 = scalar_select 0, %s10, %s8
  %v12 = vstv %s6
  %13 = vst [vmem:[#allocation3] sm:$0x1] %v12
  $region1: #{tpu_custom_call.1} parent=0
    #allocation4 [shape = 'u8[32768]{0}', space=vmem, size = 0x8000, scoped, tag = 'input window, operand 0']
    #allocation5 [shape = 's32[2]{0}', space=sflag, size = 0x8, scoped, tag = 'scoped memory for tpu_custom_call.1']
    #allocation6 [shape = 's32[2]{0}', space=sflag, size = 0x8, scoped, tag = 'scoped memory for tpu_custom_call.1']
    #allocation7 [shape = 'u8[512]{0}', space=vmem, size = 0x400, scoped, tag = 'output window, operand 0, single buffered']
    %14 = vsyncpa [#allocation5], 0
    %s15 = scalar_lea.sflag [#allocation5], 1
    %16 = vsyncpa %s15, 0
    %17 = vsyncpa [#allocation6], 0
    loop: start=0, step=1, limit=6
    $region2: #{tpu_custom_call.1} parent=1 // loop_pre_header
      _
    $region3: #{tpu_custom_call.1} parent=1 // loop_header
      %s19 = sphi 0, %s23
      %p20 = scmp.ge.s32.totalorder %s19, 6
      %s29 = sphi 0, %s31
      %s32 = sphi 0, %s29
      %s33 = sphi 0, %s32
      %s49 = sphi 0, %s33
      %s55 = sphi 0, %s57
      %s58 = sphi 0, %s55
      %s59 = sphi 0, %s58
      %s75 = sphi 0, %s59
      %s79 = sphi 0, %s79
      %s81 = sphi 0, %s79
      %s82 = sphi 0, %s81
      %s96 = sphi 0, %s82
      %s100 = sphi 0, %s100
      %s102 = sphi 0, %s100
      %s103 = sphi 0, %s102
      %s117 = sphi 0, %s103
      %s121 = sphi 0, %s121
      %s123 = sphi 0, %s121
      %s124 = sphi 0, %s123
      %s138 = sphi 0, %s124
      %s142 = sphi 0, %s142
      %s144 = sphi 0, %s142
      %s145 = sphi 0, %s144
      %s159 = sphi 0, %s145
      %s163 = sphi 0, %s163
      %s165 = sphi 0, %s163
      %s166 = sphi 0, %s165
      %s180 = sphi 0, %s166
      %s184 = sphi 0, %s184
      %s186 = sphi 0, %s184
      %s187 = sphi 0, %s186
      %s201 = sphi 0, %s187
    $region4: #{tpu_custom_call.1} parent=1 // loop_header_branch
      %22 = sbr.rel (%p20) target = $region8
    $region5: #{tpu_custom_call.1} parent=1 // loop_body
      %s24 = ssub.s32 %s19, 1
      %s25 = ssub.s32 %s19, 2
      %s26 = sadd.s32 %s19, 1
      %s27 = ssub.s32 %s19, %s26
      %p28 = scmp.eq.s32.totalorder %s27, 0
      %s30 = sadd.s32 %s29, 1
      %s31 = scalar_select %p28, %s29, %s30
      %p34 = pneg %p28
      %p35 = scmp.eq.s32.totalorder %s19, 3
      %p36 = por %p34, %p35
      %p37 = scmp.ne.s32.totalorder %s29, %s32
      %p38 = scmp.eq.s32.totalorder %s19, 0
      %p39 = por %p37, %p38
      %p40 = scmp.ne.s32.totalorder %s29, %s32
      %p41 = scmp.eq.s32.totalorder %s24, 3
      %p42 = por %p40, %p41
      %p43 = scmp.ne.s32.totalorder %s32, %s33
      %p44 = scmp.eq.s32.totalorder %s24, 0
      %p45 = por %p43, %p44
      %p46 = scmp.ne.s32.totalorder %s32, %s33
      %p47 = scmp.eq.s32.totalorder %s25, 3
      %p48 = por %p46, %p47
      %p50 = scmp.ne.s32.totalorder %s33, %s49
      %p51 = scmp.eq.s32.totalorder %s25, 0
      %p52 = por %p50, %p51
      %s53 = ssub.s32 %s19, %s26
      %p54 = scmp.eq.s32.totalorder %s53, 0
      %s56 = sadd.s32 %s55, 1
      %s57 = scalar_select %p54, %s55, %s56
      %p60 = pneg %p54
      %p61 = scmp.eq.s32.totalorder %s19, 3
      %p62 = por %p60, %p61
      %p63 = scmp.ne.s32.totalorder %s55, %s58
      %p64 = scmp.eq.s32.totalorder %s19, 0
      %p65 = por %p63, %p64
      %p66 = scmp.ne.s32.totalorder %s55, %s58
      %p67 = scmp.eq.s32.totalorder %s24, 3
      %p68 = por %p66, %p67
      %p69 = scmp.ne.s32.totalorder %s58, %s59
      %p70 = scmp.eq.s32.totalorder %s24, 0
      %p71 = por %p69, %p70
      %p72 = scmp.ne.s32.totalorder %s58, %s59
      %p73 = scmp.eq.s32.totalorder %s25, 3
      %p74 = por %p72, %p73
      %p76 = scmp.ne.s32.totalorder %s59, %s75
      %p77 = scmp.eq.s32.totalorder %s25, 0
      %p78 = por %p76, %p77
      %s80 = sadd.s32 %s79, 1
      %p83 = scmp.eq.s32.totalorder %s19, 3
      %p84 = scmp.ne.s32.totalorder %s79, %s81
      %p85 = scmp.eq.s32.totalorder %s19, 0
      %p86 = por %p84, %p85
      %p87 = scmp.ne.s32.totalorder %s79, %s81
      %p88 = scmp.eq.s32.totalorder %s24, 3
      %p89 = por %p87, %p88
      %p90 = scmp.ne.s32.totalorder %s81, %s82
      %p91 = scmp.eq.s32.totalorder %s24, 0
      %p92 = por %p90, %p91
      %p93 = scmp.ne.s32.totalorder %s81, %s82
      %p94 = scmp.eq.s32.totalorder %s25, 3
      %p95 = por %p93, %p94
      %p97 = scmp.ne.s32.totalorder %s82, %s96
      %p98 = scmp.eq.s32.totalorder %s25, 0
      %p99 = por %p97, %p98
      %s101 = sadd.s32 %s100, 1
      %p104 = scmp.eq.s32.totalorder %s19, 3
      %p105 = scmp.ne.s32.totalorder %s100, %s102
      %p106 = scmp.eq.s32.totalorder %s19, 0
      %p107 = por %p105, %p106
      %p108 = scmp.ne.s32.totalorder %s100, %s102
      %p109 = scmp.eq.s32.totalorder %s24, 3
      %p110 = por %p108, %p109
      %p111 = scmp.ne.s32.totalorder %s102, %s103
      %p112 = scmp.eq.s32.totalorder %s24, 0
      %p113 = por %p111, %p112
      %p114 = scmp.ne.s32.totalorder %s102, %s103
      %p115 = scmp.eq.s32.totalorder %s25, 3
      %p116 = por %p114, %p115
      %p118 = scmp.ne.s32.totalorder %s103, %s117
      %p119 = scmp.eq.s32.totalorder %s25, 0
      %p120 = por %p118, %p119
      %s122 = sadd.s32 %s121, 1
      %p125 = scmp.eq.s32.totalorder %s19, 3
      %p126 = scmp.ne.s32.totalorder %s121, %s123
      %p127 = scmp.eq.s32.totalorder %s19, 0
      %p128 = por %p126, %p127
      %p129 = scmp.ne.s32.totalorder %s121, %s123
      %p130 = scmp.eq.s32.totalorder %s24, 3
      %p131 = por %p129, %p130
      %p132 = scmp.ne.s32.totalorder %s123, %s124
      %p133 = scmp.eq.s32.totalorder %s24, 0
      %p134 = por %p132, %p133
      %p135 = scmp.ne.s32.totalorder %s123, %s124
      %p136 = scmp.eq.s32.totalorder %s25, 3
      %p137 = por %p135, %p136
      %p139 = scmp.ne.s32.totalorder %s124, %s138
      %p140 = scmp.eq.s32.totalorder %s25, 0
      %p141 = por %p139, %p140
      %s143 = sadd.s32 %s142, 1
      %p146 = scmp.eq.s32.totalorder %s19, 3
      %p147 = scmp.ne.s32.totalorder %s142, %s144
      %p148 = scmp.eq.s32.totalorder %s19, 0
      %p149 = por %p147, %p148
      %p150 = scmp.ne.s32.totalorder %s142, %s144
      %p151 = scmp.eq.s32.totalorder %s24, 3
      %p152 = por %p150, %p151
      %p153 = scmp.ne.s32.totalorder %s144, %s145
      %p154 = scmp.eq.s32.totalorder %s24, 0
      %p155 = por %p153, %p154
      %p156 = scmp.ne.s32.totalorder %s144, %s145
      %p157 = scmp.eq.s32.totalorder %s25, 3
      %p158 = por %p156, %p157
      %p160 = scmp.ne.s32.totalorder %s145, %s159
      %p161 = scmp.eq.s32.totalorder %s25, 0
      %p162 = por %p160, %p161
      %s164 = sadd.s32 %s163, 1
      %p167 = scmp.eq.s32.totalorder %s19, 3
      %p168 = scmp.ne.s32.totalorder %s163, %s165
      %p169 = scmp.eq.s32.totalorder %s19, 0
      %p170 = por %p168, %p169
      %p171 = scmp.ne.s32.totalorder %s163, %s165
      %p172 = scmp.eq.s32.totalorder %s24, 3
      %p173 = por %p171, %p172
      %p174 = scmp.ne.s32.totalorder %s165, %s166
      %p175 = scmp.eq.s32.totalorder %s24, 0
      %p176 = por %p174, %p175
      %p177 = scmp.ne.s32.totalorder %s165, %s166
      %p178 = scmp.eq.s32.totalorder %s25, 3
      %p179 = por %p177, %p178
      %p181 = scmp.ne.s32.totalorder %s166, %s180
      %p182 = scmp.eq.s32.totalorder %s25, 0
      %p183 = por %p181, %p182
      %s185 = sadd.s32 %s184, 1
      %p188 = scmp.eq.s32.totalorder %s19, 3
      %p189 = scmp.ne.s32.totalorder %s184, %s186
      %p190 = scmp.eq.s32.totalorder %s19, 0
      %p191 = por %p189, %p190
      %p192 = scmp.ne.s32.totalorder %s184, %s186
      %p193 = scmp.eq.s32.totalorder %s24, 3
      %p194 = por %p192, %p193
      %p195 = scmp.ne.s32.totalorder %s186, %s187
      %p196 = scmp.eq.s32.totalorder %s24, 0
      %p197 = por %p195, %p196
      %p198 = scmp.ne.s32.totalorder %s186, %s187
      %p199 = scmp.eq.s32.totalorder %s25, 3
      %p200 = por %p198, %p199
      %p202 = scmp.ne.s32.totalorder %s187, %s201
      %p203 = scmp.eq.s32.totalorder %s25, 0
      %p204 = por %p202, %p203
      %p205 = scmp.le.s32.totalorder 1, %s19
      %p206 = scmp.lt.s32.totalorder %s19, 5
      %p207 = pnand %p205, %p206
      %p208 = pneg %p207
      // Predicated region
      $region9: #{tpu_custom_call.1} parent=5 // pred_check
        _
      $region10: #{tpu_custom_call.1} parent=5 // pred_check_branch
        %210 = sbr.rel (%p207) target = $region12
      $region11: #{tpu_custom_call.1} parent=5 // pred_region
        %s211 = ssub.s32 %s19, 1
        // Predicated region
        $region13: #{tpu_custom_call.1} parent=11 // pred_check
          %p212 = pneg %p92
        $region14: #{tpu_custom_call.1} parent=11 // pred_check_branch
          %214 = sbr.rel (%p212) target = $region16
        $region15: #{tpu_custom_call.1} parent=11 // pred_region
          _
        $region16: #{tpu_custom_call.1} parent=11 // pred_fallthru
          _
        // Predicated region
        $region17: #{tpu_custom_call.1} parent=11 // pred_check
          %p215 = pneg %p113
        $region18: #{tpu_custom_call.1} parent=11 // pred_check_branch
          %217 = sbr.rel (%p215) target = $region20
        $region19: #{tpu_custom_call.1} parent=11 // pred_region
          _
        $region20: #{tpu_custom_call.1} parent=11 // pred_fallthru
          _
        // Predicated region
        $region21: #{tpu_custom_call.1} parent=11 // pred_check
          %p218 = pneg %p134
        $region22: #{tpu_custom_call.1} parent=11 // pred_check_branch
          %220 = sbr.rel (%p218) target = $region24
        $region23: #{tpu_custom_call.1} parent=11 // pred_region
          _
        $region24: #{tpu_custom_call.1} parent=11 // pred_fallthru
          _
        // Predicated region
        $region25: #{tpu_custom_call.1} parent=11 // pred_check
          %p221 = pneg %p155
        $region26: #{tpu_custom_call.1} parent=11 // pred_check_branch
          %223 = sbr.rel (%p221) target = $region28
        $region27: #{tpu_custom_call.1} parent=11 // pred_region
          _
        $region28: #{tpu_custom_call.1} parent=11 // pred_fallthru
          _
        // Predicated region
        $region29: #{tpu_custom_call.1} parent=11 // pred_check
          %p224 = pneg %p176
        $region30: #{tpu_custom_call.1} parent=11 // pred_check_branch
          %226 = sbr.rel (%p224) target = $region32
        $region31: #{tpu_custom_call.1} parent=11 // pred_region
          _
        $region32: #{tpu_custom_call.1} parent=11 // pred_fallthru
          _
      $region12: #{tpu_custom_call.1} parent=5 // pred_fallthru
        _
      %p227 = scmp.lt.s32.totalorder %s19, 4
      // Predicated region
      $region33: #{tpu_custom_call.1} parent=5 // pred_check
        %p228 = pneg %p227
      $region34: #{tpu_custom_call.1} parent=5 // pred_check_branch
        %230 = sbr.rel (%p228) target = $region36
      $region35: #{tpu_custom_call.1} parent=5 // pred_region
        // Predicated region
        $region37: #{tpu_custom_call.1} parent=35 // pred_check
          %p231 = pneg %p39
        $region38: #{tpu_custom_call.1} parent=35 // pred_check_branch
          %233 = sbr.rel (%p231) target = $region40
        $region39: #{tpu_custom_call.1} parent=35 // pred_region
          %s234 = sand.u32 %s29, 1
          %s235 = scalar_lea.sflag [#allocation5], %s234
          %s236 = sand.u32 %s29, 1
          %s237 = smul.addr %s236, 32
          %s238 = scalar_lea.vmem [#allocation4], %s237
          %s239 = smul.u32 4, %s19
          %s241 = ssub.s32 512, 512
          %242 = vsyncadd %s235, %s241
          %s243 = smul.addr %s239, 128
          %s244 = scalar_lea.hbm %s0, %s243
          %s246 = sshll.u32 %s238, 4
          %s247 = int_to_ptr.vmem [resolvable:$true] %s246
          %249 = dma.hbm_to_vmem [thread:$0]  %s244, 512, %s247, %s235
        $region40: #{tpu_custom_call.1} parent=35 // pred_fallthru
          _
        // Predicated region
        $region41: #{tpu_custom_call.1} parent=35 // pred_check
          %p250 = pneg %p65
        $region42: #{tpu_custom_call.1} parent=35 // pred_check_branch
          %252 = sbr.rel (%p250) target = $region44
        $region43: #{tpu_custom_call.1} parent=35 // pred_region
          %s253 = smul.u32 4, %s19
          %p254 = scmp.lt.s32.totalorder %s253, 15
          %s255 = scalar_select %p254, %s253, 15
          %s256 = scalar_lea.vmem %s1, %s255
          %s257 = smul.u32 4, %s19
        $region44: #{tpu_custom_call.1} parent=35 // pred_fallthru
          _
      $region36: #{tpu_custom_call.1} parent=5 // pred_fallthru
        _
      %p258 = scmp.le.s32.totalorder 1, %s19
      %p259 = scmp.lt.s32.totalorder %s19, 5
      %p260 = pnand %p258, %p259
      %p261 = pneg %p260
      // Predicated region
      $region45: #{tpu_custom_call.1} parent=5 // pred_check
        _
      $region46: #{tpu_custom_call.1} parent=5 // pred_check_branch
        %263 = sbr.rel (%p260) target = $region48
      $region47: #{tpu_custom_call.1} parent=5 // pred_region
        %s264 = ssub.s32 %s19, 1
        %s265 = sand.u32 %s32, 1
        %s266 = scalar_lea.sflag [#allocation5], %s265
        %s267 = sand.u32 %s32, 1
        %s268 = smul.addr %s267, 32
        %s269 = scalar_lea.vmem [#allocation4], %s268
        // Predicated region
        $region49: #{tpu_custom_call.1} parent=47 // pred_check
          %p270 = pneg %p45
        $region50: #{tpu_custom_call.1} parent=47 // pred_check_branch
          %272 = sbr.rel (%p270) target = $region52
        $region51: #{tpu_custom_call.1} parent=47 // pred_region
          %273 = dma.done %s266, 512
        $region52: #{tpu_custom_call.1} parent=47 // pred_fallthru
          _
        %s274 = sand.u32 %s32, 1
        %s275 = scalar_lea.sflag [#allocation5], %s274
        %s276 = sand.u32 %s32, 1
        %s277 = smul.addr %s276, 32
        %s278 = scalar_lea.vmem [#allocation4], %s277
        %p279 = pneg %p45
        %p280 = pneg %p42
        %s281 = smul.u32 4, %s24
        %p282 = scmp.lt.s32.totalorder %s281, 15
        %s283 = scalar_select %p282, %s281, 15
        %s284 = scalar_lea.vmem %s1, %s283
        %p285 = pneg %p71
        %p286 = pneg %p68
        %p287 = pneg %p92
        %p288 = pneg %p89
        %p289 = pneg %p113
        %p290 = pneg %p110
        %p291 = pneg %p134
        %p292 = pneg %p131
        %p293 = pneg %p155
        %p294 = pneg %p152
        %p295 = pneg %p176
        %p296 = pneg %p173
        %p297 = pneg %p197
        %p298 = pneg %p194
        %s299 = smul.u32 4, %s24
        %s300 = smul.u32 4, %s24
        %p301 = scmp.lt.s32.totalorder %s300, 15
        %s302 = scalar_select %p301, %s300, 15
        %s303 = scalar_lea.vmem %s1, %s302
        %s304 = smul.u32 4, %s24
        %p305 = scmp.eq.s32.totalorder %s24, 0
        // Predicated region
        $region53: #{tpu_custom_call.1} parent=47 // pred_check
          %p306 = pneg %p305
        $region54: #{tpu_custom_call.1} parent=47 // pred_check_branch
          %308 = sbr.rel (%p306) target = $region56
        $region55: #{tpu_custom_call.1} parent=47 // pred_region
          %vm309 = vcmask 130048
          %310 = vst.msk [vmem:[#allocation2] sm:$0xff] %vm309, 0.0
        $region56: #{tpu_custom_call.1} parent=47 // pred_fallthru
          _
        %v311 = vld [vmem:[%s3] sm:$0xff]
        %v312 = vld [vmem:[%s3 + $0x8] sm:$0xff]
        %v313 = vld [vmem:[%s269] sm:$0xff]
        %v314 = vld [vmem:[%s269 + $0x8] sm:$0xff]
        %v315 = vld [vmem:[%s269 + $0x10] sm:$0xff]
        %v316 = vld [vmem:[%s269 + $0x18] sm:$0xff]
        %v317 = vld [vmem:[%s4] sm:$0xff]
        %v318 = vld [vmem:[%s4 + $0x8] sm:$0xff]
        %320 = vset.pattern.permute.xlu0 0
        %321 = vperm.xlu0 %320, %v317
        %v322 = vpop.permute.xlu0 %321
        %325 = vset.pattern.permute.xlu0 0
        %326 = vperm.xlu0 %325, %v318
        %v327 = vpop.permute.xlu0 %326
        %vm329 = vcmask 64512
        %v331 = vsel %vm329, %v311, 0
        %v334 = vsel %vm329, %v312, 0
        %336 = vmatprep.subr.mxu0 %v314
        %337 = vmatpush1.msra.mxu0 %v313
        %338 = vmatprep.subr.mxu0 0.0
        %339 = vmatpush1.msra.mxu0 0.0
        %340 = vmatprep.subr.mxu0 0.0
        %341 = vmatpush1.msra.mxu0 0.0
        %342 = vmatprep.subr.mxu0 0.0
        %343 = vmatpush1.msra.mxu0 0.0
        %344 = vmatprep.subr.mxu0 0.0
        %345 = vmatpush1.msra.mxu0 0.0
        %346 = vmatprep.subr.mxu0 0.0
        %347 = vmatpush1.msra.mxu0 0.0
        %348 = vmatprep.subr.mxu0 0.0
        %349 = vmatpush1.msra.mxu0 0.0
        %350 = vmatprep.subr.mxu0 0.0
        %351 = vmatpush1.msra.mxu0 0.0
        %352 = vmatprep.subr.mxu0 0.0
        %353 = vmatpush1.msra.mxu0 0.0
        %354 = vmatprep.subr.mxu0 0.0
        %355 = vmatpush1.msra.mxu0 0.0
        %356 = vmatprep.subr.mxu0 0.0
        %357 = vmatpush1.msra.mxu0 0.0
        %358 = vmatprep.subr.mxu0 0.0
        %359 = vmatpush1.msra.mxu0 0.0
        %360 = vmatprep.subr.mxu0 0.0
        %361 = vmatpush1.msra.mxu0 0.0
        %362 = vmatprep.subr.mxu0 0.0
        %363 = vmatpush1.msra.mxu0 0.0
        %364 = vmatprep.subr.mxu0 0.0
        %365 = vmatpush1.msra.mxu0 0.0
        %366 = vmatprep.subr.mxu0 0.0
        %367 = vmatpush1.msra.mxu0 0.0
        %368 = vmatprep.subr.mxu0 0.0
        %369 = vmatpush1.msra.mxu0 0.0
        %370 = vmatprep.subr.mxu0 0.0
        %371 = vmatpush1.msra.mxu0 0.0
        %372 = vmatprep.subr.mxu0 0.0
        %373 = vmatpush1.msra.mxu0 0.0
        %374 = vmatprep.subr.mxu0 0.0
        %375 = vmatpush1.msra.mxu0 0.0
        %376 = vmatprep.subr.mxu0 0.0
        %377 = vmatpush1.msra.mxu0 0.0
        %378 = vmatprep.subr.mxu0 0.0
        %379 = vmatpush1.msra.mxu0 0.0
        %380 = vmatprep.subr.mxu0 0.0
        %381 = vmatpush1.msra.mxu0 0.0
        %382 = vmatprep.subr.mxu0 0.0
        %383 = vmatpush1.msra.mxu0 0.0
        %384 = vmatprep.subr.mxu0 0.0
        %385 = vmatpush1.msra.mxu0 0.0
        %386 = vmatprep.subr.mxu0 0.0
        %387 = vmatpush1.msra.mxu0 0.0
        %388 = vmatprep.subr.mxu0 0.0
        %389 = vmatpush1.msra.mxu0 0.0
        %390 = vmatprep.subr.mxu0 0.0
        %391 = vmatpush1.msra.mxu0 0.0
        %392 = vmatprep.subr.mxu0 0.0
        %393 = vmatpush1.msra.mxu0 0.0
        %394 = vmatprep.subr.mxu0 0.0
        %395 = vmatpush1.msra.mxu0 0.0
        %396 = vmatprep.subr.mxu0 0.0
        %397 = vmatpush1.msra.mxu0 0.0
        %398 = vmatprep.subr.mxu0 0.0
        %399 = vmatpush1.msra.mxu0 0.0
        %400 = vmatprep.mubr.f32.mxu0 0.0
        %401 = vmatmul.mubr.f32.gmra.mrb[0].mxu0 %v331
        %v402 = vpop.f32.mrb[0].mxu0
        %v403 = vadd.f32 %v322, %v402
        %v404 = vpop.f32.mrb[0].mxu0
        %v405 = vadd.f32 %v322, %v404
        %406 = vmatprep.mubr.f32.mxu0 0.0
        %407 = vmatmul.mubr.f32.gmra.mrb[0].mxu0 %v334
        %v408 = vpop.f32.mrb[0].mxu0
        %v409 = vadd.f32 %v327, %v408
        %v410 = vpop.f32.mrb[0].mxu0
        %v411 = vadd.f32 %v327, %v410
        %412 = vdwg.mxu0
        %413 = vmatprep.subr.mxu0 %v316
        %414 = vmatpush1.msra.mxu0 %v315
        %415 = vmatprep.subr.mxu0 0.0
        %416 = vmatpush1.msra.mxu0 0.0
        %417 = vmatprep.subr.mxu0 0.0
        %418 = vmatpush1.msra.mxu0 0.0
        %419 = vmatprep.subr.mxu0 0.0
        %420 = vmatpush1.msra.mxu0 0.0
        %421 = vmatprep.subr.mxu0 0.0
        %422 = vmatpush1.msra.mxu0 0.0
        %423 = vmatprep.subr.mxu0 0.0
        %424 = vmatpush1.msra.mxu0 0.0
        %425 = vmatprep.subr.mxu0 0.0
        %426 = vmatpush1.msra.mxu0 0.0
        %427 = vmatprep.subr.mxu0 0.0
        %428 = vmatpush1.msra.mxu0 0.0
        %429 = vmatprep.subr.mxu0 0.0
        %430 = vmatpush1.msra.mxu0 0.0
        %431 = vmatprep.subr.mxu0 0.0
        %432 = vmatpush1.msra.mxu0 0.0
        %433 = vmatprep.subr.mxu0 0.0
        %434 = vmatpush1.msra.mxu0 0.0
        %435 = vmatprep.subr.mxu0 0.0
        %436 = vmatpush1.msra.mxu0 0.0
        %437 = vmatprep.subr.mxu0 0.0
        %438 = vmatpush1.msra.mxu0 0.0
        %439 = vmatprep.subr.mxu0 0.0
        %440 = vmatpush1.msra.mxu0 0.0
        %441 = vmatprep.subr.mxu0 0.0
        %442 = vmatpush1.msra.mxu0 0.0
        %443 = vmatprep.subr.mxu0 0.0
        %444 = vmatpush1.msra.mxu0 0.0
        %445 = vmatprep.subr.mxu0 0.0
        %446 = vmatpush1.msra.mxu0 0.0
        %447 = vmatprep.subr.mxu0 0.0
        %448 = vmatpush1.msra.mxu0 0.0
        %449 = vmatprep.subr.mxu0 0.0
        %450 = vmatpush1.msra.mxu0 0.0
        %451 = vmatprep.subr.mxu0 0.0
        %452 = vmatpush1.msra.mxu0 0.0
        %453 = vmatprep.subr.mxu0 0.0
        %454 = vmatpush1.msra.mxu0 0.0
        %455 = vmatprep.subr.mxu0 0.0
        %456 = vmatpush1.msra.mxu0 0.0
        %457 = vmatprep.subr.mxu0 0.0
        %458 = vmatpush1.msra.mxu0 0.0
        %459 = vmatprep.subr.mxu0 0.0
        %460 = vmatpush1.msra.mxu0 0.0
        %461 = vmatprep.subr.mxu0 0.0
        %462 = vmatpush1.msra.mxu0 0.0
        %463 = vmatprep.subr.mxu0 0.0
        %464 = vmatpush1.msra.mxu0 0.0
        %465 = vmatprep.subr.mxu0 0.0
        %466 = vmatpush1.msra.mxu0 0.0
        %467 = vmatprep.subr.mxu0 0.0
        %468 = vmatpush1.msra.mxu0 0.0
        %469 = vmatprep.subr.mxu0 0.0
        %470 = vmatpush1.msra.mxu0 0.0
        %471 = vmatprep.subr.mxu0 0.0
        %472 = vmatpush1.msra.mxu0 0.0
        %473 = vmatprep.subr.mxu0 0.0
        %474 = vmatpush1.msra.mxu0 0.0
        %475 = vmatprep.subr.mxu0 0.0
        %476 = vmatpush1.msra.mxu0 0.0
        %477 = vmatprep.mubr.f32.mxu0 0.0
        %478 = vmatmul.mubr.f32.gmra.mrb[0].mxu0 %v331
        %v479 = vpop.f32.mrb[0].mxu0
        %v480 = vadd.f32 %v322, %v479
        %v481 = vpop.f32.mrb[0].mxu0
        %v482 = vadd.f32 %v322, %v481
        %483 = vmatprep.mubr.f32.mxu0 0.0
        %484 = vmatmul.mubr.f32.gmra.mrb[0].mxu0 %v334
        %v485 = vpop.f32.mrb[0].mxu0
        %v486 = vadd.f32 %v327, %v485
        %v487 = vpop.f32.mrb[0].mxu0
        %v488 = vadd.f32 %v327, %v487
        %489 = vdwg.mxu0
        %v490 = vmax.f32 %v403, 0.0
        %v491 = vmax.f32 %v405, 0.0
        %v492 = vmax.f32 %v480, 0.0
        %v493 = vmax.f32 %v482, 0.0
        %v494 = vmax.f32 %v409, 0.0
        %v495 = vmax.f32 %v411, 0.0
        %v496 = vmax.f32 %v486, 0.0
        %v497 = vmax.f32 %v488, 0.0
        %v498 = vlaneseq
        %v499 = vshrl.u32 %v498, 7
        %v500 = vld [vmem:[%s303] sm:$0xf]
        %v501 = vlaneseq
        %v502 = vshrl.u32 %v501, 7
        %v503 = vsub.s32 0, %v502
        %v504 = vrot.slane %v500, %v503
        %v505 = vlaneseq
        %v506 = vshrl.u32 %v505, 7
        %v507 = vsub.s32 1, %v506
        %v508 = vrot.slane %v500, %v507
        %v509 = vlaneseq
        %v510 = vshrl.u32 %v509, 7
        %v511 = vsub.s32 2, %v510
        %v512 = vrot.slane %v500, %v511
        %v513 = vlaneseq
        %v514 = vshrl.u32 %v513, 7
        %v515 = vsub.s32 3, %v514
        %v516 = vrot.slane %v500, %v515
        %vm517 = vcmp.eq.s32.totalorder %v499, %v504
        %vm518 = vcmp.eq.s32.totalorder %v499, %v508
        %vm519 = vcmp.eq.s32.totalorder %v499, %v512
        %vm520 = vcmp.eq.s32.totalorder %v499, %v516
        %v521 = vsel %vm517, 1, 0
        %v522 = vsel %vm518, 1, 0
        %v523 = vsel %vm519, 1, 0
        %v524 = vsel %vm520, 1, 0
        %v525 = vcvt.s32.f32 %v521
        %v526 = vcvt.s32.f32 %v522
        %v527 = vcvt.s32.f32 %v523
        %v528 = vcvt.s32.f32 %v524
        %v529 = vld [vmem:[#allocation2] sm:$0xff]
        %530 = vmatprep.subr.mxu0 %v491
        %531 = vmatpush1.xpose.msra.mxu0 %v490
        %532 = vmatprep.subr.mxu0 %v495
        %533 = vmatpush1.xpose.msra.mxu0 %v494
        %534 = vmatprep.subr.mxu0 0.0
        %535 = vmatpush1.xpose.msra.mxu0 0.0
        %536 = vmatprep.subr.mxu0 0.0
        %537 = vmatpush1.xpose.msra.mxu0 0.0
        %538 = vmatprep.subr.mxu0 0.0
        %539 = vmatpush1.xpose.msra.mxu0 0.0
        %540 = vmatprep.subr.mxu0 0.0
        %541 = vmatpush1.xpose.msra.mxu0 0.0
        %542 = vmatprep.subr.mxu0 0.0
        %543 = vmatpush1.xpose.msra.mxu0 0.0
        %544 = vmatprep.subr.mxu0 0.0
        %545 = vmatpush1.xpose.msra.mxu0 0.0
        %546 = vmatprep.subr.mxu0 0.0
        %547 = vmatpush1.xpose.msra.mxu0 0.0
        %548 = vmatprep.subr.mxu0 0.0
        %549 = vmatpush1.xpose.msra.mxu0 0.0
        %550 = vmatprep.subr.mxu0 0.0
        %551 = vmatpush1.xpose.msra.mxu0 0.0
        %552 = vmatprep.subr.mxu0 0.0
        %553 = vmatpush1.xpose.msra.mxu0 0.0
        %554 = vmatprep.subr.mxu0 0.0
        %555 = vmatpush1.xpose.msra.mxu0 0.0
        %556 = vmatprep.subr.mxu0 0.0
        %557 = vmatpush1.xpose.msra.mxu0 0.0
        %558 = vmatprep.subr.mxu0 0.0
        %559 = vmatpush1.xpose.msra.mxu0 0.0
        %560 = vmatprep.subr.mxu0 0.0
        %561 = vmatpush1.xpose.msra.mxu0 0.0
        %562 = vmatprep.subr.mxu0 0.0
        %563 = vmatpush1.xpose.msra.mxu0 0.0
        %564 = vmatprep.subr.mxu0 0.0
        %565 = vmatpush1.xpose.msra.mxu0 0.0
        %566 = vmatprep.subr.mxu0 0.0
        %567 = vmatpush1.xpose.msra.mxu0 0.0
        %568 = vmatprep.subr.mxu0 0.0
        %569 = vmatpush1.xpose.msra.mxu0 0.0
        %570 = vmatprep.subr.mxu0 0.0
        %571 = vmatpush1.xpose.msra.mxu0 0.0
        %572 = vmatprep.subr.mxu0 0.0
        %573 = vmatpush1.xpose.msra.mxu0 0.0
        %574 = vmatprep.subr.mxu0 0.0
        %575 = vmatpush1.xpose.msra.mxu0 0.0
        %576 = vmatprep.subr.mxu0 0.0
        %577 = vmatpush1.xpose.msra.mxu0 0.0
        %578 = vmatprep.subr.mxu0 0.0
        %579 = vmatpush1.xpose.msra.mxu0 0.0
        %580 = vmatprep.subr.mxu0 0.0
        %581 = vmatpush1.xpose.msra.mxu0 0.0
        %582 = vmatprep.subr.mxu0 0.0
        %583 = vmatpush1.xpose.msra.mxu0 0.0
        %584 = vmatprep.subr.mxu0 0.0
        %585 = vmatpush1.xpose.msra.mxu0 0.0
        %586 = vmatprep.subr.mxu0 0.0
        %587 = vmatpush1.xpose.msra.mxu0 0.0
        %588 = vmatprep.subr.mxu0 0.0
        %589 = vmatpush1.xpose.msra.mxu0 0.0
        %590 = vmatprep.subr.mxu0 0.0
        %591 = vmatpush1.xpose.msra.mxu0 0.0
        %592 = vmatprep.subr.mxu0 0.0
        %593 = vmatpush1.xpose.msra.mxu0 0.0
        %594 = vmatprep.mubr.f32.mxu0 %v526
        %595 = vmatmul.mubr.f32.gmra.mrb[0].mxu0 %v525
        %v596 = vpop.f32.mrb[0].mxu0
        %v597 = vadd.f32 0.0, %v596
        %v598 = vpop.f32.mrb[0].mxu0
        %599 = vdwg.mxu0
        %600 = vmatprep.subr.mxu0 %v493
        %601 = vmatpush1.xpose.msra.mxu0 %v492
        %602 = vmatprep.subr.mxu0 %v497
        %603 = vmatpush1.xpose.msra.mxu0 %v496
        %604 = vmatprep.subr.mxu0 0.0
        %605 = vmatpush1.xpose.msra.mxu0 0.0
        %606 = vmatprep.subr.mxu0 0.0
        %607 = vmatpush1.xpose.msra.mxu0 0.0
        %608 = vmatprep.subr.mxu0 0.0
        %609 = vmatpush1.xpose.msra.mxu0 0.0
        %610 = vmatprep.subr.mxu0 0.0
        %611 = vmatpush1.xpose.msra.mxu0 0.0
        %612 = vmatprep.subr.mxu0 0.0
        %613 = vmatpush1.xpose.msra.mxu0 0.0
        %614 = vmatprep.subr.mxu0 0.0
        %615 = vmatpush1.xpose.msra.mxu0 0.0
        %616 = vmatprep.subr.mxu0 0.0
        %617 = vmatpush1.xpose.msra.mxu0 0.0
        %618 = vmatprep.subr.mxu0 0.0
        %619 = vmatpush1.xpose.msra.mxu0 0.0
        %620 = vmatprep.subr.mxu0 0.0
        %621 = vmatpush1.xpose.msra.mxu0 0.0
        %622 = vmatprep.subr.mxu0 0.0
        %623 = vmatpush1.xpose.msra.mxu0 0.0
        %624 = vmatprep.subr.mxu0 0.0
        %625 = vmatpush1.xpose.msra.mxu0 0.0
        %626 = vmatprep.subr.mxu0 0.0
        %627 = vmatpush1.xpose.msra.mxu0 0.0
        %628 = vmatprep.subr.mxu0 0.0
        %629 = vmatpush1.xpose.msra.mxu0 0.0
        %630 = vmatprep.subr.mxu0 0.0
        %631 = vmatpush1.xpose.msra.mxu0 0.0
        %632 = vmatprep.subr.mxu0 0.0
        %633 = vmatpush1.xpose.msra.mxu0 0.0
        %634 = vmatprep.subr.mxu0 0.0
        %635 = vmatpush1.xpose.msra.mxu0 0.0
        %636 = vmatprep.subr.mxu0 0.0
        %637 = vmatpush1.xpose.msra.mxu0 0.0
        %638 = vmatprep.subr.mxu0 0.0
        %639 = vmatpush1.xpose.msra.mxu0 0.0
        %640 = vmatprep.subr.mxu0 0.0
        %641 = vmatpush1.xpose.msra.mxu0 0.0
        %642 = vmatprep.subr.mxu0 0.0
        %643 = vmatpush1.xpose.msra.mxu0 0.0
        %644 = vmatprep.subr.mxu0 0.0
        %645 = vmatpush1.xpose.msra.mxu0 0.0
        %646 = vmatprep.subr.mxu0 0.0
        %647 = vmatpush1.xpose.msra.mxu0 0.0
        %648 = vmatprep.subr.mxu0 0.0
        %649 = vmatpush1.xpose.msra.mxu0 0.0
        %650 = vmatprep.subr.mxu0 0.0
        %651 = vmatpush1.xpose.msra.mxu0 0.0
        %652 = vmatprep.subr.mxu0 0.0
        %653 = vmatpush1.xpose.msra.mxu0 0.0
        %654 = vmatprep.subr.mxu0 0.0
        %655 = vmatpush1.xpose.msra.mxu0 0.0
        %656 = vmatprep.subr.mxu0 0.0
        %657 = vmatpush1.xpose.msra.mxu0 0.0
        %658 = vmatprep.subr.mxu0 0.0
        %659 = vmatpush1.xpose.msra.mxu0 0.0
        %660 = vmatprep.subr.mxu0 0.0
        %661 = vmatpush1.xpose.msra.mxu0 0.0
        %662 = vmatprep.subr.mxu0 0.0
        %663 = vmatpush1.xpose.msra.mxu0 0.0
        %664 = vmatprep.mubr.f32.mxu0 %v528
        %665 = vmatmul.mubr.f32.gmra.mrb[0].mxu0 %v527
        %v666 = vpop.f32.mrb[0].mxu0
        %v667 = vadd.f32 %v597, %v666
        %v668 = vpop.f32.mrb[0].mxu0
        %669 = vdwg.mxu0
        %v670 = vadd.f32 %v529, %v667
        %vm671 = vcmask 130048
        %672 = vst.msk [vmem:[#allocation2] sm:$0xff] %vm671, %v670
        %p673 = scmp.eq.s32.totalorder %s24, 3
        // Predicated region
        $region57: #{tpu_custom_call.1} parent=47 // pred_check
          %p674 = pneg %p673
        $region58: #{tpu_custom_call.1} parent=47 // pred_check_branch
          %676 = sbr.rel (%p674) target = $region60
        $region59: #{tpu_custom_call.1} parent=47 // pred_region
          %v677 = vld [vmem:[%s5] sm:$0x3]
          %v678 = vld [vmem:[#allocation2] sm:$0xff]
          %v680 = vsel %vm671, %v677, 0
          %v683 = vsel %vm671, %v678, 0
          %685 = vmatprep.subr.mxu0 0.0
          %686 = vmatpush1.xpose.msra.mxu0 %v683
          %687 = vmatprep.subr.mxu0 0.0
          %688 = vmatpush1.xpose.msra.mxu0 0.0
          %689 = vmatprep.subr.mxu0 0.0
          %690 = vmatpush1.xpose.msra.mxu0 0.0
          %691 = vmatprep.subr.mxu0 0.0
          %692 = vmatpush1.xpose.msra.mxu0 0.0
          %693 = vmatprep.subr.mxu0 0.0
          %694 = vmatpush1.xpose.msra.mxu0 0.0
          %695 = vmatprep.subr.mxu0 0.0
          %696 = vmatpush1.xpose.msra.mxu0 0.0
          %697 = vmatprep.subr.mxu0 0.0
          %698 = vmatpush1.xpose.msra.mxu0 0.0
          %699 = vmatprep.subr.mxu0 0.0
          %700 = vmatpush1.xpose.msra.mxu0 0.0
          %701 = vmatprep.subr.mxu0 0.0
          %702 = vmatpush1.xpose.msra.mxu0 0.0
          %703 = vmatprep.subr.mxu0 0.0
          %704 = vmatpush1.xpose.msra.mxu0 0.0
          %705 = vmatprep.subr.mxu0 0.0
          %706 = vmatpush1.xpose.msra.mxu0 0.0
          %707 = vmatprep.subr.mxu0 0.0
          %708 = vmatpush1.xpose.msra.mxu0 0.0
          %709 = vmatprep.subr.mxu0 0.0
          %710 = vmatpush1.xpose.msra.mxu0 0.0
          %711 = vmatprep.subr.mxu0 0.0
          %712 = vmatpush1.xpose.msra.mxu0 0.0
          %713 = vmatprep.subr.mxu0 0.0
          %714 = vmatpush1.xpose.msra.mxu0 0.0
          %715 = vmatprep.subr.mxu0 0.0
          %716 = vmatpush1.xpose.msra.mxu0 0.0
          %717 = vmatprep.subr.mxu0 0.0
          %718 = vmatpush1.xpose.msra.mxu0 0.0
          %719 = vmatprep.subr.mxu0 0.0
          %720 = vmatpush1.xpose.msra.mxu0 0.0
          %721 = vmatprep.subr.mxu0 0.0
          %722 = vmatpush1.xpose.msra.mxu0 0.0
          %723 = vmatprep.subr.mxu0 0.0
          %724 = vmatpush1.xpose.msra.mxu0 0.0
          %725 = vmatprep.subr.mxu0 0.0
          %726 = vmatpush1.xpose.msra.mxu0 0.0
          %727 = vmatprep.subr.mxu0 0.0
          %728 = vmatpush1.xpose.msra.mxu0 0.0
          %729 = vmatprep.subr.mxu0 0.0
          %730 = vmatpush1.xpose.msra.mxu0 0.0
          %731 = vmatprep.subr.mxu0 0.0
          %732 = vmatpush1.xpose.msra.mxu0 0.0
          %733 = vmatprep.subr.mxu0 0.0
          %734 = vmatpush1.xpose.msra.mxu0 0.0
          %735 = vmatprep.subr.mxu0 0.0
          %736 = vmatpush1.xpose.msra.mxu0 0.0
          %737 = vmatprep.subr.mxu0 0.0
          %738 = vmatpush1.xpose.msra.mxu0 0.0
          %739 = vmatprep.subr.mxu0 0.0
          %740 = vmatpush1.xpose.msra.mxu0 0.0
          %741 = vmatprep.subr.mxu0 0.0
          %742 = vmatpush1.xpose.msra.mxu0 0.0
          %743 = vmatprep.subr.mxu0 0.0
          %744 = vmatpush1.xpose.msra.mxu0 0.0
          %745 = vmatprep.subr.mxu0 0.0
          %746 = vmatpush1.xpose.msra.mxu0 0.0
          %747 = vmatprep.subr.mxu0 0.0
          %748 = vmatpush1.xpose.msra.mxu0 0.0
          %749 = vmatprep.mubr.f32.mxu0 0.0
          %750 = vmatmul.mubr.f32.gmra.mrb[0].mxu0 %v680
          %v751 = vpop.f32.mrb[0].mxu0
          %v752 = vadd.f32 0.0, %v751
          %v753 = vpop.f32.mrb[0].mxu0
          %754 = vdwg.mxu0
          %v755 = vld [vmem:[%s2] sm:$0x1]
          %v756 = vrcp.pop %v755
          %v758 = vlaneseq
          %v759 = vshrl.u32 %v758, 7
          %v760 = vsub.s32 0, %v759
          %v761 = vrot.slane %v756, %v760
          %v763 = vmul.f32 %v752, %v761
          %v765 = vrot.slane %v763, 1
          %v767 = vadd.f32 %v752, %v765
          %v768 = vld [vmem:[#allocation3] sm:$0x1]
          %770 = vset.pattern.permute.xlu0 0
          %771 = vperm.xlu0 %770, %v768
          %v772 = vpop.permute.xlu0 %771
          %v774 = vlaneseq
          %v775 = vshrl.u32 %v774, 7
          %v776 = vsub.s32 0, %v775
          %v777 = vrot.slane %v772, %v776
          %v778 = vadd.f32 %v767, %v777
          %v779 = vxor.u32 %v778, 2147483648
          %v780 = vmul.f32 %v779, 1.442695
          %v781 = vpow.pop %v780
          %v782 = vadd.f32 %v781, 1.0
          %v783 = vrcp.pop %v782
          %v784 = vmul.f32 1.0, %v783
          %vm785 = vcmask 57344
          %786 = vst.msk [vmem:[#allocation7] sm:$0x1] %vm785, %v784
        $region60: #{tpu_custom_call.1} parent=47 // pred_fallthru
          _
        // Predicated region
        $region61: #{tpu_custom_call.1} parent=47 // pred_check
          %p787 = pneg %p194
        $region62: #{tpu_custom_call.1} parent=47 // pred_check_branch
          %789 = sbr.rel (%p787) target = $region64
        $region63: #{tpu_custom_call.1} parent=47 // pred_region
          %s791 = ssub.s32 16, 16
          %792 = vsyncadd [#allocation6], %s791
          %s794 = sshll.u32 [#allocation7], 4
          %s795 = int_to_ptr.vmem [resolvable:$true] %s794
          %797 = dma.vmem_to_hbm [thread:$0]  %s795, 16, %s7, [#allocation6]
        $region64: #{tpu_custom_call.1} parent=47 // pred_fallthru
          _
        // Predicated region
        $region65: #{tpu_custom_call.1} parent=47 // pred_check
          %p798 = pneg %p194
        $region66: #{tpu_custom_call.1} parent=47 // pred_check_branch
          %800 = sbr.rel (%p798) target = $region68
        $region67: #{tpu_custom_call.1} parent=47 // pred_region
          %801 = dma.done [#allocation6], 16
        $region68: #{tpu_custom_call.1} parent=47 // pred_fallthru
          _
      $region48: #{tpu_custom_call.1} parent=5 // pred_fallthru
        _
      %p802 = scmp.le.s32.totalorder 2, %s19
      // Predicated region
      $region69: #{tpu_custom_call.1} parent=5 // pred_check
        %p803 = pneg %p802
      $region70: #{tpu_custom_call.1} parent=5 // pred_check_branch
        %805 = sbr.rel (%p803) target = $region72
      $region71: #{tpu_custom_call.1} parent=5 // pred_region
        %s806 = ssub.s32 %s19, 2
      $region72: #{tpu_custom_call.1} parent=5 // pred_fallthru
        _
    $region6: #{tpu_custom_call.1} parent=1 // loop_footer
      %s23 = sadd.s32 1, %s19
    $region7: #{tpu_custom_call.1} parent=1 // loop_footer_branch
      %18 = sbr.rel target = $region3
    $region8: #{tpu_custom_call.1} parent=1 // loop_exit
      _
    %807 = vsyncpa [#allocation5], 1
    %s808 = scalar_lea.sflag [#allocation5], 1
    %809 = vsyncpa %s808, 1
    %810 = vsyncpa [#allocation6], 1
    %s811 = scalar_lea.sflag [#allocation6], 1
    %812 = vsyncpa %s811, 1

</llo_original>
